<compile_context>
chip_gen: v5e
topology: v5e:2x2
jax: 0.10.0
libtpu: 0.0.40
codegen_flags: <defaults>
</compile_context>

<pallas_src>
import functools

import jax
import jax.numpy as jnp
from jax.experimental import pallas as pl
from jax.experimental.pallas import tpu as pltpu


_NEG_BIG = -1e30  # bias for padded vocab columns -> exp() underflows to 0


def _round_up(x, m):
    return ((x + m - 1) // m) * m


def _vmem_capacity_bytes():
    """Per-TensorCore VMEM capacity; conservative 64 MiB fallback (v7x)."""
    try:
        return int(pltpu.get_tpu_info().vmem_capacity_bytes)
    except Exception:
        return 64 << 20


def _pick_tn(d_model, vocab):
    # Lane-dense vocab tiles.  For small d_model the per-step matmul is tiny,
    # so use bigger vocab tiles (fewer pipeline steps, larger DMAs).
    cap = 2048 if d_model <= 1024 else 512
    return min(cap, _round_up(vocab, 128))


def _generator_kernel(x_ref, w_ref, b_ref, o_ref, m_ref, l_ref):
    """One (row-tile, vocab-tile) step of log_softmax(x @ W + b, axis=-1).

    x_ref: (TM, d_model)   VMEM  bf16, resident across the vocab axis
    w_ref: (d_model, TN)   VMEM  bf16 weight tile
    b_ref: (1, V_pad)      VMEM  f32 bias, resident (DMA'd once)
    o_ref: (TM, V_pad)     VMEM  resident full-row output slab
    m_ref, l_ref: (TM, 1)  VMEM  running max / sum-of-exp scratch
    """
    j = pl.program_id(1)
    tn = w_ref.shape[1]

    @pl.when(j == 0)
    def _init():
        m_ref[...] = jnp.full_like(m_ref, -jnp.inf)
        l_ref[...] = jnp.zeros_like(l_ref)

    col = pl.multiple_of(j * tn, tn)

    # MXU matmul: bf16 operands (cast done once in the wrapper), f32 accum.
    logits = jnp.dot(x_ref[...], w_ref[...],
                     preferred_element_type=jnp.float32)
    logits = logits + b_ref[:, pl.ds(col, tn)]

    # Online logsumexp update across vocab tiles.
    m_prev = m_ref[...]
    m_new = jnp.maximum(m_prev, jnp.max(logits, axis=-1, keepdims=True))
    l_ref[...] = l_ref[...] * jnp.exp(m_prev - m_new) + jnp.sum(
        jnp.exp(logits - m_new), axis=-1, keepdims=True)
    m_ref[...] = m_new

    # Stash raw logits into the resident full-row output slab (lane-aligned).
    o_ref[:, pl.ds(col, tn)] = logits.astype(o_ref.dtype)

    # Last vocab tile: finalize log_softmax in place (single HBM writeback).
    @pl.when(j == pl.num_programs(1) - 1)
    def _finalize():
        lse = m_ref[...] + jnp.log(l_ref[...])
        o_ref[...] = (o_ref[...].astype(jnp.float32) - lse).astype(o_ref.dtype)


def prepare_generator_params(w, b, *, tn=None):
    """One-time weight prep: bf16 cast + vocab padding to a multiple of tn.

    Call once and keep (w_p, b_p) resident: doing this per forward call would
    add a full extra HBM read+write of the weight before the kernel starts.
    """
    d_model, vocab = w.shape
    if tn is None:
        tn = _pick_tn(d_model, vocab)
    v_pad = _round_up(vocab, tn)
    w_p = w.astype(jnp.bfloat16)
    b_p = b.astype(jnp.float32).reshape(1, vocab)
    if v_pad != vocab:
        w_p = jnp.pad(w_p, ((0, 0), (0, v_pad - vocab)))
        # Padded vocab columns get a huge negative bias: exp() -> 0, never max.
        b_p = jnp.pad(b_p, ((0, 0), (0, v_pad - vocab)),
                      constant_values=_NEG_BIG)
    return w_p, b_p


@functools.partial(jax.jit,
                   static_argnames=("vocab", "tm", "tn", "out_dtype"))
def generator_forward(x, w_p, b_p, *, vocab, tm=None, tn=None,
                      out_dtype=jnp.float32):
    """log_softmax(x @ W + b, axis=-1)  ==  Generator.forward.

    x:   (batch, seq, d_model)
    w_p: (d_model, v_pad) bf16   from prepare_generator_params
    b_p: (1, v_pad)       f32    from prepare_generator_params
    returns (batch, seq, vocab) in out_dtype (f32 default; bf16 halves the
    resident slab / output HBM write if the consumer tolerates it).
    """
    batch, seq, d_model = x.shape
    v_pad = w_p.shape[1]
    n = batch * seq

    if tn is None:
        tn = _pick_tn(d_model, vocab)
    assert v_pad % tn == 0 and v_pad == _round_up(vocab, tn), (
        "params must be prepared with the same tn (see prepare_generator_params)")

    out_bytes = jnp.dtype(out_dtype).itemsize

    # --- generation-aware tile selection --------------------------------------
    vmem_cap = _vmem_capacity_bytes()          # 128 MiB v5e/v6e, 64 MiB v7x
    budget = vmem_cap - (8 << 20)              # compiler / pipeline headroom

    def _vmem_need(t):
        return (2 * t * d_model * 2            # x tiles (bf16, double-buffered)
                + 2 * d_model * tn * 2         # weight tiles (bf16, double-buffered)
                + 2 * v_pad * 4                # resident bias
                + 2 * t * v_pad * out_bytes    # resident full-row output slab
                + 2 * t * 4 * 2)               # m / l scratch

    if tm is None:
        tm = 512                               # maximize weight reuse (W re-read n/tm times)
        while tm > 16 and _vmem_need(tm) > budget:
            tm //= 2
        tm = max(16, min(tm, _round_up(n, 16)))  # don't over-pad tiny N; bf16 tile >=16 rows
    n_pad = _round_up(n, tm)

    # TODO(synk): on v7x with a single row tile (decode-sized n), split the
    # vocab axis across the two TensorCores and merge (m, l) before finalize.

    # --- x prep (cheap relative to W: cast to bf16 once, pad ragged rows) -----
    x2 = x.reshape(n, d_model).astype(jnp.bfloat16)
    if n_pad != n:
        x2 = jnp.pad(x2, ((0, n_pad - n), (0, 0)))

    grid = (n_pad // tm, v_pad // tn)

    vmem_bytes = _vmem_need(tm) + (4 << 20)
    vmem_bytes = min(max(vmem_bytes, 32 << 20), vmem_cap - (2 << 20))

    out = pl.pallas_call(
        _generator_kernel,
        out_shape=jax.ShapeDtypeStruct((n_pad, v_pad), out_dtype),
        grid_spec=pltpu.PrefetchScalarGridSpec(
            num_scalar_prefetch=0,
            grid=grid,
            in_specs=[
                pl.BlockSpec((tm, d_model), lambda i, j: (i, 0)),
                pl.BlockSpec((d_model, tn), lambda i, j: (0, j)),
                pl.BlockSpec((1, v_pad), lambda i, j: (0, 0)),   # resident bias
            ],
            out_specs=pl.BlockSpec((tm, v_pad), lambda i, j: (i, 0)),
            scratch_shapes=[
                pltpu.VMEM((tm, 1), jnp.float32),   # running max
                pltpu.VMEM((tm, 1), jnp.float32),   # running sum of exp
            ],
        ),
        compiler_params=pltpu.CompilerParams(
            dimension_semantics=("parallel", "arbitrary"),
            vmem_limit_bytes=vmem_bytes,
        ),
    )(x2, w_p, b_p)

    # TODO(synk): tile the K (d_model) axis as well if d_model grows past a few
    # thousand (full-K weight tiles are assumed to fit VMEM here).
    out = out[:n, :vocab]
    return out.reshape(batch, seq, vocab)


def init_generator_params(key, d_model, vocab):
    """Deterministic synthetic params matching nn.Linear(d_model, vocab)."""
    kw, kb = jax.random.split(key)
    bound = 1.0 / (d_model ** 0.5)  # torch nn.Linear default init range
    # torch stores weight as (vocab, d_model); we store the transpose.
    w = jax.random.uniform(
        kw, (d_model, vocab), jnp.float32, minval=-bound, maxval=bound)
    b = jax.random.uniform(
        kb, (vocab,), jnp.float32, minval=-bound, maxval=bound)
    return w, b


if __name__ == "__main__":
    key = jax.random.PRNGKey(0)
    k_x, k_p = jax.random.split(key)

    batch, seq, d_model, vocab = 2, 8, 32, 128
    x = jax.random.normal(k_x, (batch, seq, d_model), jnp.float32)
    w, b = init_generator_params(k_p, d_model, vocab)

    # One-time weight prep (kept resident across forward calls).
    w_p, b_p = prepare_generator_params(w, b)

    out = generator_forward(x, w_p, b_p, vocab=vocab)
    jax.block_until_ready(out)
    assert out.shape == (batch, seq, vocab)

    # Reference (f32). bf16 MXU operands with f32 accumulation -> loosened tol.
    ref = jax.nn.log_softmax(jnp.einsum("bsd,dv->bsv", x, w) + b, axis=-1)
    assert jnp.allclose(out, ref, atol=2e-2, rtol=2e-2), float(
        jnp.max(jnp.abs(out - ref)))

    # Ragged row count (exercises the N-padding path).
    x2 = jax.random.normal(k_x, (1, 5, d_model), jnp.float32)
    out2 = generator_forward(x2, w_p, b_p, vocab=vocab)
    ref2 = jax.nn.log_softmax(jnp.einsum("bsd,dv->bsv", x2, w) + b, axis=-1)
    assert jnp.allclose(out2, ref2, atol=2e-2, rtol=2e-2)

    # Ragged vocab (exercises the -1e30-bias vocab-padding path).
    w3, b3 = init_generator_params(k_p, d_model, 200)
    w3_p, b3_p = prepare_generator_params(w3, b3)
    out3 = generator_forward(x, w3_p, b3_p, vocab=200)
    ref3 = jax.nn.log_softmax(jnp.einsum("bsd,dv->bsv", x, w3) + b3, axis=-1)
    assert out3.shape == (batch, seq, 200)
    assert jnp.allclose(out3, ref3, atol=2e-2, rtol=2e-2)

    print("KERNEL_OK")
</pallas_src>

<mosaic_0001>
module attributes {stable_mosaic.version = 11 : i64} {
  func.func @_generator_kernel(%arg0: i32, %arg1: i32, %arg2: memref<16x32xbf16, #tpu.memory_space<vmem>>, %arg3: memref<32x128xbf16, #tpu.memory_space<vmem>>, %arg4: memref<1x128xf32, #tpu.memory_space<vmem>>, %arg5: memref<16x128xf32, #tpu.memory_space<vmem>>, %arg6: memref<16x1xf32, #tpu.memory_space<vmem>>, %arg7: memref<16x1xf32, #tpu.memory_space<vmem>>) attributes {dimension_semantics = [#tpu.dimension_semantics<parallel>, #tpu.dimension_semantics<arbitrary>], iteration_bounds = array<i64: 1, 1>, scalar_prefetch = 0 : i64, scratch_operands = 2 : i64, tpu.core_type = #tpu.core_type<tc>, window_params = [{transform_indices = @transform_0, window_bounds = array<i64: 16, 32>}, {transform_indices = @transform_1, window_bounds = array<i64: 32, 128>}, {pipeline_mode = #tpu.pipeline_mode<synchronous>, transform_indices = @transform_2, window_bounds = array<i64: 1, 128>}, {transform_indices = @transform_3, window_bounds = array<i64: 16, 128>}]} {
    %c0_i32 = arith.constant 0 : i32
    %0 = arith.cmpi eq, %arg1, %c0_i32 : i32
    %1 = arith.extui %0 : i1 to i32
    %c0_i32_0 = arith.constant 0 : i32
    %2 = arith.cmpi ne, %1, %c0_i32_0 : i32
    scf.if %2 {
      %cst_18 = arith.constant 0xFF800000 : f32
      %33 = vector.broadcast %cst_18 : f32 to vector<16x1xf32>
      %c0_19 = arith.constant 0 : index
      %c0_20 = arith.constant 0 : index
      %34 = vector.load %arg6[%c0_19, %c0_20] : memref<16x1xf32, #tpu.memory_space<vmem>>, vector<16x1xf32>
      tpu.vector_store %arg6[%c0_19, %c0_20], %33 {strides = array<i32>} : memref<16x1xf32, #tpu.memory_space<vmem>>, vector<16x1xf32>,
      %cst_21 = arith.constant 0.000000e+00 : f32
      %35 = vector.broadcast %cst_21 : f32 to vector<16x1xf32>
      %c0_22 = arith.constant 0 : index
      %c0_23 = arith.constant 0 : index
      %36 = vector.load %arg7[%c0_22, %c0_23] : memref<16x1xf32, #tpu.memory_space<vmem>>, vector<16x1xf32>
      tpu.vector_store %arg7[%c0_22, %c0_23], %35 {strides = array<i32>} : memref<16x1xf32, #tpu.memory_space<vmem>>, vector<16x1xf32>,
    } else {
    }
    %c128_i32 = arith.constant 128 : i32
    %3 = arith.muli %arg1, %c128_i32 : i32
    %4 = tpu.assume_multiple %3, 128 : i32
    %c0 = arith.constant 0 : index
    %c0_1 = arith.constant 0 : index
    %5 = vector.load %arg2[%c0, %c0_1] : memref<16x32xbf16, #tpu.memory_space<vmem>>, vector<16x32xbf16>
    %c0_2 = arith.constant 0 : index
    %c0_3 = arith.constant 0 : index
    %6 = vector.load %arg3[%c0_2, %c0_3] : memref<32x128xbf16, #tpu.memory_space<vmem>>, vector<32x128xbf16>
    %cst = arith.constant dense<0.000000e+00> : vector<16x128xf32>
    %7 = tpu.matmul %5, %6, %cst {dimension_numbers = #tpu.dot_dimension_numbers<[1], [0], [0], [1], [0, 0, 1, 1], [], []>} : vector<16x32xbf16>, vector<32x128xbf16>, vector<16x128xf32> -> vector<16x128xf32>
    %c0_4 = arith.constant 0 : index
    %8 = arith.index_cast %4 : i32 to index
    %9 = vector.load %arg4[%c0_4, %8] : memref<1x128xf32, #tpu.memory_space<vmem>>, vector<1x128xf32>
    %10 = vector.broadcast %9 : vector<1x128xf32> to vector<16x128xf32>
    %11 = arith.addf %7, %10 : vector<16x128xf32>
    %c0_5 = arith.constant 0 : index
    %c0_6 = arith.constant 0 : index
    %12 = vector.load %arg6[%c0_5, %c0_6] : memref<16x1xf32, #tpu.memory_space<vmem>>, vector<16x1xf32>
    %cst_7 = arith.constant dense<0xFF800000> : vector<16xf32>
    %13 = vector.multi_reduction <maximumf>, %11, %cst_7 [1] : vector<16x128xf32> to vector<16xf32>
    %14 = vector.shape_cast %13 : vector<16xf32> to vector<16x1xf32>
    %15 = arith.maximumf %12, %14 : vector<16x1xf32>
    %c0_8 = arith.constant 0 : index
    %c0_9 = arith.constant 0 : index
    %16 = vector.load %arg7[%c0_8, %c0_9] : memref<16x1xf32, #tpu.memory_space<vmem>>, vector<16x1xf32>
    %17 = arith.subf %12, %15 : vector<16x1xf32>
    %18 = math.exp %17 : vector<16x1xf32>
    %19 = arith.mulf %16, %18 : vector<16x1xf32>
    %20 = vector.broadcast %15 : vector<16x1xf32> to vector<16x128xf32>
    %21 = arith.subf %11, %20 : vector<16x128xf32>
    %22 = math.exp %21 : vector<16x128xf32>
    %cst_10 = arith.constant dense<0.000000e+00> : vector<16xf32>
    %23 = vector.multi_reduction <add>, %22, %cst_10 [1] : vector<16x128xf32> to vector<16xf32>
    %24 = vector.shape_cast %23 : vector<16xf32> to vector<16x1xf32>
    %25 = arith.addf %19, %24 : vector<16x1xf32>
    %c0_11 = arith.constant 0 : index
    %c0_12 = arith.constant 0 : index
    %26 = vector.load %arg7[%c0_11, %c0_12] : memref<16x1xf32, #tpu.memory_space<vmem>>, vector<16x1xf32>
    tpu.vector_store %arg7[%c0_11, %c0_12], %25 {strides = array<i32>} : memref<16x1xf32, #tpu.memory_space<vmem>>, vector<16x1xf32>,
    %c0_13 = arith.constant 0 : index
    %c0_14 = arith.constant 0 : index
    %27 = vector.load %arg6[%c0_13, %c0_14] : memref<16x1xf32, #tpu.memory_space<vmem>>, vector<16x1xf32>
    tpu.vector_store %arg6[%c0_13, %c0_14], %15 {strides = array<i32>} : memref<16x1xf32, #tpu.memory_space<vmem>>, vector<16x1xf32>,
    %c0_15 = arith.constant 0 : index
    %28 = arith.index_cast %4 : i32 to index
    %29 = vector.load %arg5[%c0_15, %28] : memref<16x128xf32, #tpu.memory_space<vmem>>, vector<16x128xf32>
    tpu.vector_store %arg5[%c0_15, %28], %11 {strides = array<i32>} : memref<16x128xf32, #tpu.memory_space<vmem>>, vector<16x128xf32>,
    %c0_i32_16 = arith.constant 0 : i32
    %30 = arith.cmpi eq, %arg1, %c0_i32_16 : i32
    %31 = arith.extui %30 : i1 to i32
    %c0_i32_17 = arith.constant 0 : i32
    %32 = arith.cmpi ne, %31, %c0_i32_17 : i32
    scf.if %32 {
      %c0_18 = arith.constant 0 : index
      %c0_19 = arith.constant 0 : index
      %33 = vector.load %arg6[%c0_18, %c0_19] : memref<16x1xf32, #tpu.memory_space<vmem>>, vector<16x1xf32>
      %c0_20 = arith.constant 0 : index
      %c0_21 = arith.constant 0 : index
      %34 = vector.load %arg7[%c0_20, %c0_21] : memref<16x1xf32, #tpu.memory_space<vmem>>, vector<16x1xf32>
      %35 = math.log %34 : vector<16x1xf32>
      %36 = arith.addf %33, %35 : vector<16x1xf32>
      %c0_22 = arith.constant 0 : index
      %c0_23 = arith.constant 0 : index
      %37 = vector.load %arg5[%c0_22, %c0_23] : memref<16x128xf32, #tpu.memory_space<vmem>>, vector<16x128xf32>
      %38 = vector.broadcast %36 : vector<16x1xf32> to vector<16x128xf32>
      %39 = arith.subf %37, %38 : vector<16x128xf32>
      %c0_24 = arith.constant 0 : index
      %c0_25 = arith.constant 0 : index
      %40 = vector.load %arg5[%c0_24, %c0_25] : memref<16x128xf32, #tpu.memory_space<vmem>>, vector<16x128xf32>
      tpu.vector_store %arg5[%c0_24, %c0_25], %39 {strides = array<i32>} : memref<16x128xf32, #tpu.memory_space<vmem>>, vector<16x128xf32>,
    } else {
    }
    return
  }
  func.func @transform_0(%arg0: i32, %arg1: i32) -> (i32, i32) {
    %c0_i32 = arith.constant 0 : i32
    %c0_i32_0 = arith.constant 0 : i32
    return %arg0, %c0_i32 : i32, i32
  }
  func.func @transform_1(%arg0: i32, %arg1: i32) -> (i32, i32) {
    %c0_i32 = arith.constant 0 : i32
    %c0_i32_0 = arith.constant 0 : i32
    return %c0_i32, %arg1 : i32, i32
  }
  func.func @transform_2(%arg0: i32, %arg1: i32) -> (i32, i32) {
    %c0_i32 = arith.constant 0 : i32
    %c0_i32_0 = arith.constant 0 : i32
    %c0_i32_1 = arith.constant 0 : i32
    return %c0_i32, %c0_i32_0 : i32, i32
  }
  func.func @transform_3(%arg0: i32, %arg1: i32) -> (i32, i32) {
    %c0_i32 = arith.constant 0 : i32
    %c0_i32_0 = arith.constant 0 : i32
    return %arg0, %c0_i32 : i32, i32
  }
}

</mosaic_0001>

<llo_original>
// kernel: generator_forward.1
$region0: #{generator_forward.1}
  #allocation0 [shape = 'u32[]', space=smem, size = 0x4, offset = 0x4, fixed_abs, tag = 'smem constant byte address 0x4 - core index']
  #allocation1 [shape = 'u32[72,128]{1,0:T(1,128)}', space=vmem, size = 0x9000, scoped, tag = 'internal scratch']
  #allocation2 [shape = 'f32[16,1]{1,0:T(8,128)}', space=vmem, size = 0x2000, scoped, tag = 'scratch operand']
  #allocation3 [shape = 'f32[16,1]{1,0:T(8,128)}', space=vmem, size = 0x2000, scoped, tag = 'scratch operand']
  %s0 = inlined_call_operand.vmem [shape: bf16[16,32], index: 0, kind: input, shape index: {}]
  %s1 = inlined_call_operand.vmem [shape: bf16[32,128], index: 1, kind: input, shape index: {}]
  %s2 = inlined_call_operand.vmem [shape: f32[1,128], index: 2, kind: input, shape index: {}]
  %s3 = inlined_call_operand.hbm [shape: f32[16,128], index: 3, kind: output, shape index: {}]
  %s4 = sld [smem:[#allocation0]]
  $region30: #{generator_forward.1} parent=0
    _
  %s6 = ssub.s32 1, %s4
  %s7 = scalar_select 0, %s6, %s4
  $region1: #{generator_forward.1} parent=0
    #allocation4 [shape = 'u8[8192]{0}', space=vmem, size = 0x2000, scoped, tag = 'output window, operand 0, single buffered']
    #allocation5 [shape = 's32[1]{0}', space=sflag, size = 0x4, scoped, tag = 'scoped memory for generator_forward.1']
    %8 = vsyncpa [#allocation5], 0
    // Predicated region
    $region2: #{generator_forward.1} parent=1 // pred_check
      _
    $region3: #{generator_forward.1} parent=1 // pred_check_branch
      %10 = sbr.rel (0) target = $region5
    $region4: #{generator_forward.1} parent=1 // pred_region
      _
    $region5: #{generator_forward.1} parent=1 // pred_fallthru
      _
    // Predicated region
    $region6: #{generator_forward.1} parent=1 // pred_check
      _
    $region7: #{generator_forward.1} parent=1 // pred_check_branch
      %12 = sbr.rel (0) target = $region9
    $region8: #{generator_forward.1} parent=1 // pred_region
      _
    $region9: #{generator_forward.1} parent=1 // pred_fallthru
      _
    // Predicated region
    $region10: #{generator_forward.1} parent=1 // pred_check
      _
    $region11: #{generator_forward.1} parent=1 // pred_check_branch
      %14 = sbr.rel (0) target = $region13
    $region12: #{generator_forward.1} parent=1 // pred_region
      _
    $region13: #{generator_forward.1} parent=1 // pred_fallthru
      _
    %p16 = scmp.eq.s32.totalorder 0, 0
    // Predicated region
    $region14: #{generator_forward.1} parent=1 // pred_check
      %p17 = pneg %p16
    $region15: #{generator_forward.1} parent=1 // pred_check_branch
      %19 = sbr.rel (%p17) target = $region17
    $region16: #{generator_forward.1} parent=1 // pred_region
      %vm20 = vcmask 7168
      %21 = vst.msk [vmem:[#allocation2] sm:$0xff] %vm20, -inf
      %22 = vst.msk [vmem:[#allocation2 + $0x8] sm:$0xff] %vm20, -inf
      %23 = vst.msk [vmem:[#allocation3] sm:$0xff] %vm20, 0.0
      %24 = vst.msk [vmem:[#allocation3 + $0x8] sm:$0xff] %vm20, 0.0
    $region17: #{generator_forward.1} parent=1 // pred_fallthru
      _
    %s25 = smul.u32 0, 128
    %v26 = vld [vmem:[%s0] sm:$0xf]
    %v27 = vld [vmem:[%s0 + $0x4] sm:$0xf]
    %v28 = vld [vmem:[%s1] sm:$0xf]
    %v29 = vld [vmem:[%s1 + $0x4] sm:$0xf]
    %v30 = vld [vmem:[%s1 + $0x8] sm:$0xf]
    %v31 = vld [vmem:[%s1 + $0xc] sm:$0xf]
    %s32 = sshra.s32 %s25, 7
    %s33 = sand.u32 %s25, 127
    %s34 = scalar_lea.vmem %s2, %s32
    %v35 = vld [vmem:[%s34] sm:$0x1]
    %v37 = vperm.slane %v35, 0
    %v41 = vunpack.c.l.b16 %v26
    %v42 = vunpack.c.l.b16 %v27
    %v43 = vpack.c.b16 %v42, %v41
    %v48 = vunpack.c.l.b16 %v28
    %v49 = vunpack.c.l.b16 %v29
    %v50 = vunpack.c.l.b16 %v30
    %v51 = vunpack.c.l.b16 %v31
    %v52 = vpack.c.b16 %v49, %v48
    %v53 = vpack.c.b16 %v51, %v50
    %vm56 = vcmask 261120
    %v58 = vsel %vm56, %v43, 0
    %60 = vmatpush.bf16.msra.mxu0 0
    %61 = vmatpush.bf16.msra.mxu0 0
    %62 = vmatpush.bf16.msra.mxu0 0
    %63 = vmatpush.bf16.msra.mxu0 0
    %64 = vmatpush.bf16.msra.mxu0 0
    %65 = vmatpush.bf16.msra.mxu0 0
    %66 = vmatpush.bf16.msra.mxu0 %v53
    %67 = vmatpush.bf16.msra.mxu0 %v52
    %68 = vmatmul.bf16.gmra.mxu0 %v58
    %v69 = vpop.f32.mrf.mxu0
    %v70 = vadd.f32 %v37, %v69
    %v71 = vpop.f32.mrf.mxu0
    %v72 = vadd.f32 %v37, %v71
    %73 = vdwg.mxu0
    %v74 = vld [vmem:[#allocation2] sm:$0xff]
    %v75 = vld [vmem:[#allocation2 + $0x8] sm:$0xff]
    %76 = vmax.xlane.f32.xlu0 %v70
    %v77 = vpop.xlane.xlu0 %76
    %78 = vmax.xlane.f32.xlu0 %v72
    %v79 = vpop.xlane.xlu0 %78
    %v80 = vmax.f32 %v74, %v77
    %v81 = vmax.f32 %v75, %v79
    %v82 = vld [vmem:[#allocation3] sm:$0xff]
    %v83 = vld [vmem:[#allocation3 + $0x8] sm:$0xff]
    %v84 = vsub.f32 %v74, %v80
    %v85 = vsub.f32 %v75, %v81
    %v86 = vmul.f32 %v84, 1.442695
    %v87 = vpow.pop %v86
    %v88 = vmul.f32 %v85, 1.442695
    %v89 = vpow.pop %v88
    %v90 = vmul.f32 %v82, %v87
    %v91 = vmul.f32 %v83, %v89
    %93 = vset.pattern.permute.xlu0 0
    %94 = vperm.xlu0 %93, %v80
    %v95 = vpop.permute.xlu0 %94
    %98 = vset.pattern.permute.xlu0 0
    %99 = vperm.xlu0 %98, %v81
    %v100 = vpop.permute.xlu0 %99
    %v102 = vsub.f32 %v70, %v95
    %v103 = vsub.f32 %v72, %v100
    %v104 = vmul.f32 %v102, 1.442695
    %v105 = vpow.pop %v104
    %v106 = vmul.f32 %v103, 1.442695
    %v107 = vpow.pop %v106
    %108 = vadd.xlane.f32.xlu0 %v105
    %v109 = vpop.xlane.xlu0 %108
    %110 = vadd.xlane.f32.xlu0 %v107
    %v111 = vpop.xlane.xlu0 %110
    %v112 = vadd.f32 %v90, %v109
    %v113 = vadd.f32 %v91, %v111
    %vm114 = vcmask 7168
    %115 = vst.msk [vmem:[#allocation3] sm:$0xff] %vm114, %v112
    %116 = vst.msk [vmem:[#allocation3 + $0x8] sm:$0xff] %vm114, %v113
    %117 = vst.msk [vmem:[#allocation2] sm:$0xff] %vm114, %v80
    %118 = vst.msk [vmem:[#allocation2 + $0x8] sm:$0xff] %vm114, %v81
    %s119 = scalar_lea.vmem [#allocation4], %s32
    %120 = vst [vmem:[%s119] sm:$0xff] %v70
    %121 = vst [vmem:[%s119 + $0x8] sm:$0xff] %v72
    // Predicated region
    $region18: #{generator_forward.1} parent=1 // pred_check
      %p122 = pneg %p16
    $region19: #{generator_forward.1} parent=1 // pred_check_branch
      %124 = sbr.rel (%p122) target = $region21
    $region20: #{generator_forward.1} parent=1 // pred_region
      %v125 = vld [vmem:[#allocation2] sm:$0xff]
      %v126 = vld [vmem:[#allocation2 + $0x8] sm:$0xff]
      %v127 = vld [vmem:[#allocation3] sm:$0xff]
      %v128 = vld [vmem:[#allocation3 + $0x8] sm:$0xff]
      %v129 = vlog2.pop %v127
      %v130 = vmul.f32 %v129, 0.6931472
      %v131 = vlog2.pop %v128
      %v132 = vmul.f32 %v131, 0.6931472
      %v133 = vadd.f32 %v125, %v130
      %v134 = vadd.f32 %v126, %v132
      %v135 = vld [vmem:[#allocation4] sm:$0xff]
      %v136 = vld [vmem:[#allocation4 + $0x8] sm:$0xff]
      %138 = vset.pattern.permute.xlu0 0
      %139 = vperm.xlu0 %138, %v133
      %v140 = vpop.permute.xlu0 %139
      %143 = vset.pattern.permute.xlu0 0
      %144 = vperm.xlu0 %143, %v134
      %v145 = vpop.permute.xlu0 %144
      %v147 = vsub.f32 %v135, %v140
      %v148 = vsub.f32 %v136, %v145
      %149 = vst [vmem:[#allocation4] sm:$0xff] %v147
      %150 = vst [vmem:[#allocation4 + $0x8] sm:$0xff] %v148
    $region21: #{generator_forward.1} parent=1 // pred_fallthru
      _
    // Predicated region
    $region22: #{generator_forward.1} parent=1 // pred_check
      _
    $region23: #{generator_forward.1} parent=1 // pred_check_branch
      %152 = sbr.rel (0) target = $region25
    $region24: #{generator_forward.1} parent=1 // pred_region
      %154 = vsyncadd [#allocation5], 0
      %s155 = sshll.u32 [#allocation4], 4
      %s156 = int_to_ptr.vmem [resolvable:$true] %s155
      %s157 = sshll.u32 %s3, 4
      %s158 = int_to_ptr.hbm [resolvable:$true] %s157
      %163 = dma.vmem_to_hbm [thread:$0]  %s156, 256, %s158, [#allocation5], 128, 128, 8
    $region25: #{generator_forward.1} parent=1 // pred_fallthru
      _
    // Predicated region
    $region26: #{generator_forward.1} parent=1 // pred_check
      _
    $region27: #{generator_forward.1} parent=1 // pred_check_branch
      %165 = sbr.rel (0) target = $region29
    $region28: #{generator_forward.1} parent=1 // pred_region
      %167 = dma.done [#allocation5], 256
    $region29: #{generator_forward.1} parent=1 // pred_fallthru
      _
    %168 = vsyncpa [#allocation5], 1

</llo_original>
